<compile_context>
chip_gen: v7x
topology: tpu7x:2x2x1
jax: 0.10.0
libtpu: 0.0.40
codegen_flags: <defaults>
</compile_context>

<pallas_src>
import math

import jax
import jax.numpy as jnp
from jax.experimental import pallas as pl
from jax.experimental.pallas import tpu as pltpu

BN_EPS = 1e-5
PSTRIDE = 8  # row stride between stages inside the param slab (8-aligned)


def _round_up(x, m):
    return (x + m - 1) // m * m


# ---------------------------------------------------------------------------
# Kernel factory: closes over the static layout (chromosome widths, slab row
# offsets) and returns a kernel taking (x_0..x_{nc-1}, w_slab, p_slab, out).
# ---------------------------------------------------------------------------
def _make_kernel(num_inputs, latent_dim):
    nc = len(num_inputs)
    c1, c2 = 32 * nc, 16 * nc
    sum_n = sum(num_inputs)

    w1_off = 0
    w2_off = _round_up(sum_n, 8)
    w3_off = w2_off + _round_up(c1, 8)

    x_row_offs = []
    off = 0
    for n in num_inputs:
        x_row_offs.append(off)
        off += n

    def bn_prelu(y, p_ref, base, width):
        # Rows of the param slab (static slices, 8-aligned row group):
        #   base+0: gamma, base+1: beta, base+2: PReLU slope (per-feature).
        g = p_ref[base:base + 1, 0:width]
        be = p_ref[base + 1:base + 2, 0:width]
        a = p_ref[base + 2:base + 3, 0:width]
        # Training-mode BN with two-pass (numerically safe) variance.
        mean = jnp.mean(y, axis=0, keepdims=True)           # XLU reduce
        d = y - mean
        var = jnp.mean(d * d, axis=0, keepdims=True)
        z = d * (g * jax.lax.rsqrt(var + BN_EPS)) + be        # EUP rsqrt + FMA
        return jnp.where(z >= 0, z, a * z)                    # PReLU

    def kernel(*refs):
        x_refs = refs[:nc]
        w_ref = refs[nc]
        p_ref = refs[nc + 1]
        o_ref = refs[nc + 2]

        # Layer 1: block-diagonal matmul expressed as a sum of per-chromosome
        # chunk matmuls -> the torch concat(x, dim=1) is folded away.
        h1 = None
        for xr, roff, n in zip(x_refs, x_row_offs, num_inputs):
            part = jnp.dot(
                xr[...],
                w_ref[w1_off + roff:w1_off + roff + n, 0:c1],
                preferred_element_type=jnp.float32)
            h1 = part if h1 is None else h1 + part
        h1 = bn_prelu(h1, p_ref, 0 * PSTRIDE, c1)             # (B, 32*nc)

        # Layer 2 (block-diagonal as one dense matmul; zeros are free here).
        h2 = jnp.dot(h1, w_ref[w2_off:w2_off + c1, 0:c2],
                     preferred_element_type=jnp.float32)
        h2 = bn_prelu(h2, p_ref, 1 * PSTRIDE, c2)             # (B, 16*nc)

        # Final encode layer.  Column order == branch order, so the PyTorch
        # concat of branch outputs is a no-op.
        h3 = jnp.dot(h2, w_ref[w3_off:w3_off + c2, 0:latent_dim],
                     preferred_element_type=jnp.float32)
        # (B, latent) is < 128 lanes -> masked store; negligible at this size.
        o_ref[...] = bn_prelu(h3, p_ref, 2 * PSTRIDE, latent_dim)

    return kernel


def make_chrom_encoder_forward(num_inputs, latent_dim=32):
    """Returns a jitted forward(w_slab, p_slab, *xs) -> (B, latent_dim)."""
    nc = len(num_inputs)
    kernel = _make_kernel(num_inputs, latent_dim)
    vmem = pl.BlockSpec(memory_space=pltpu.MemorySpace.VMEM)  # whole-array

    @jax.jit
    def forward(w_slab, p_slab, *xs):
        B = xs[0].shape[0]
        return pl.pallas_call(
            kernel,
            out_shape=jax.ShapeDtypeStruct((B, latent_dim), jnp.float32),
            in_specs=[vmem] * (nc + 2),
            out_specs=vmem,
        )(*xs, w_slab, p_slab)

    return forward


# ---------------------------------------------------------------------------
# Parameter construction (mirrors ChromEncoder.__init__, incl. Linear biases).
# ---------------------------------------------------------------------------
def _xavier_uniform(key, n_in, n_out):
    bound = math.sqrt(6.0 / (n_in + n_out))
    return jax.random.uniform(key, (n_in, n_out), jnp.float32, -bound, bound)


def _linear_bias(key, n_in, n_out):
    bound = 1.0 / math.sqrt(n_in)
    return jax.random.uniform(key, (n_out,), jnp.float32, -bound, bound)


def init_chrom_encoder(key, num_inputs, latent_dim=32):
    keys = iter(jax.random.split(key, 4 * len(num_inputs) + 2))
    branches = []
    for n in num_inputs:
        branches.append(dict(
            w1=_xavier_uniform(next(keys), n, 32),
            b1=_linear_bias(next(keys), n, 32),
            g1=jnp.ones((32,), jnp.float32), be1=jnp.zeros((32,), jnp.float32),
            a1=jnp.float32(0.25),
            w2=_xavier_uniform(next(keys), 32, 16),
            b2=_linear_bias(next(keys), 32, 16),
            g2=jnp.ones((16,), jnp.float32), be2=jnp.zeros((16,), jnp.float32),
            a2=jnp.float32(0.25),
        ))
    c2 = 16 * len(num_inputs)
    final = dict(
        w3=_xavier_uniform(next(keys), c2, latent_dim),
        b3=_linear_bias(next(keys), c2, latent_dim),
        g3=jnp.ones((latent_dim,), jnp.float32),
        be3=jnp.zeros((latent_dim,), jnp.float32),
        a3=jnp.float32(0.25),
    )
    return dict(branches=branches, final=final)


def randomize_affine_params(params, key):
    """Non-trivial BN gamma/beta and PReLU slopes so the test exercises the
    general folded path (torch defaults are gamma=1, beta=0, slope=0.25)."""
    ks = iter(jax.random.split(key, 6 * len(params["branches"]) + 3))
    for b in params["branches"]:
        b["g1"] = jax.random.uniform(next(ks), (32,), jnp.float32, 0.5, 1.5)
        b["be1"] = jax.random.uniform(next(ks), (32,), jnp.float32, -0.5, 0.5)
        b["a1"] = jax.random.uniform(next(ks), (), jnp.float32, 0.05, 0.45)
        b["g2"] = jax.random.uniform(next(ks), (16,), jnp.float32, 0.5, 1.5)
        b["be2"] = jax.random.uniform(next(ks), (16,), jnp.float32, -0.5, 0.5)
        b["a2"] = jax.random.uniform(next(ks), (), jnp.float32, 0.05, 0.45)
    f = params["final"]
    latent = f["w3"].shape[1]
    f["g3"] = jax.random.uniform(next(ks), (latent,), jnp.float32, 0.5, 1.5)
    f["be3"] = jax.random.uniform(next(ks), (latent,), jnp.float32, -0.5, 0.5)
    f["a3"] = jax.random.uniform(next(ks), (), jnp.float32, 0.05, 0.45)
    return params


# ---------------------------------------------------------------------------
# One-time packing: ONE weight slab + ONE BN/PReLU param slab.
# Linear biases are intentionally NOT packed (train-mode BN cancels them).
# ---------------------------------------------------------------------------
def pack_chrom_encoder(params, num_inputs, latent_dim=32):
    br = params["branches"]
    nc = len(num_inputs)
    c1, c2 = 32 * nc, 16 * nc
    sum_n = sum(num_inputs)
    w2_off = _round_up(sum_n, 8)
    w3_off = w2_off + _round_up(c1, 8)
    rows = w3_off + _round_up(c2, 8)
    cols = max(c1, c2, latent_dim)

    w_slab = jnp.zeros((rows, cols), jnp.float32)
    r, c = 0, 0
    for b in br:                                   # W1 block-diagonal
        w_slab = w_slab.at[r:r + b["w1"].shape[0], c:c + 32].set(b["w1"])
        r += b["w1"].shape[0]
        c += 32
    r, c = w2_off, 0
    for b in br:                                   # W2 block-diagonal
        w_slab = w_slab.at[r:r + 32, c:c + 16].set(b["w2"])
        r += 32
        c += 16
    w_slab = w_slab.at[w3_off:w3_off + c2, 0:latent_dim].set(params["final"]["w3"])

    p_slab = jnp.zeros((3 * PSTRIDE, cols), jnp.float32)

    def set_row(slab, row, vec):
        return slab.at[row, 0:vec.shape[0]].set(vec)

    g1 = jnp.concatenate([b["g1"] for b in br])
    be1 = jnp.concatenate([b["be1"] for b in br])
    a1 = jnp.concatenate([jnp.full((32,), b["a1"], jnp.float32) for b in br])
    g2 = jnp.concatenate([b["g2"] for b in br])
    be2 = jnp.concatenate([b["be2"] for b in br])
    a2 = jnp.concatenate([jnp.full((16,), b["a2"], jnp.float32) for b in br])
    fin = params["final"]
    a3 = jnp.full((latent_dim,), fin["a3"], jnp.float32)

    p_slab = set_row(p_slab, 0 * PSTRIDE + 0, g1)
    p_slab = set_row(p_slab, 0 * PSTRIDE + 1, be1)
    p_slab = set_row(p_slab, 0 * PSTRIDE + 2, a1)
    p_slab = set_row(p_slab, 1 * PSTRIDE + 0, g2)
    p_slab = set_row(p_slab, 1 * PSTRIDE + 1, be2)
    p_slab = set_row(p_slab, 1 * PSTRIDE + 2, a2)
    p_slab = set_row(p_slab, 2 * PSTRIDE + 0, fin["g3"])
    p_slab = set_row(p_slab, 2 * PSTRIDE + 1, fin["be3"])
    p_slab = set_row(p_slab, 2 * PSTRIDE + 2, a3)

    return dict(w_slab=w_slab, p_slab=p_slab)


# ---------------------------------------------------------------------------
# Pure-JAX reference (per-branch, with Linear biases) for correctness check.
# ---------------------------------------------------------------------------
def _reference_forward(params, xs):
    def bn_prelu(y, g, be, a):
        mean = jnp.mean(y, axis=0, keepdims=True)
        d = y - mean
        var = jnp.mean(d * d, axis=0, keepdims=True)
        z = g * d * jax.lax.rsqrt(var + BN_EPS) + be
        return jnp.where(z >= 0, z, a * z)

    outs = []
    for b, x in zip(params["branches"], xs):
        h = bn_prelu(x @ b["w1"] + b["b1"], b["g1"], b["be1"], b["a1"])
        h = bn_prelu(h @ b["w2"] + b["b2"], b["g2"], b["be2"], b["a2"])
        outs.append(h)
    enc1 = jnp.concatenate(outs, axis=1)
    f = params["final"]
    return bn_prelu(enc1 @ f["w3"] + f["b3"], f["g3"], f["be3"], f["a3"])


if __name__ == "__main__":
    num_inputs = [16, 24, 32]      # one feature width per chromosome
    latent_dim = 32
    batch = 8                      # aligns with the 8-sublane vreg dimension

    key = jax.random.PRNGKey(0)
    k_params, k_affine, *k_xs = jax.random.split(key, 2 + len(num_inputs))

    params = init_chrom_encoder(k_params, num_inputs, latent_dim)
    params = randomize_affine_params(params, k_affine)   # exercise folded path
    packed = pack_chrom_encoder(params, num_inputs, latent_dim)

    # Non-zero-mean inputs to exercise the two-pass-variance / bias-cancel path.
    xs = [jax.random.normal(k, (batch, n), jnp.float32) + 0.5
          for k, n in zip(k_xs, num_inputs)]

    forward = make_chrom_encoder_forward(num_inputs, latent_dim)
    out = jax.block_until_ready(forward(packed["w_slab"], packed["p_slab"], *xs))

    assert out.shape == (batch, latent_dim), out.shape
    assert out.dtype == jnp.float32
    assert bool(jnp.all(jnp.isfinite(out)))

    ref = _reference_forward(params, xs)
    assert bool(jnp.allclose(out, ref, rtol=1e-3, atol=1e-3)), \
        float(jnp.max(jnp.abs(out - ref)))

    print("KERNEL_OK")
</pallas_src>

<mosaic_0001>
module attributes {stable_mosaic.version = 11 : i64} {
  func.func @kernel(%arg0: memref<8x16xf32, #tpu.memory_space<vmem>>, %arg1: memref<8x24xf32, #tpu.memory_space<vmem>>, %arg2: memref<8x32xf32, #tpu.memory_space<vmem>>, %arg3: memref<216x96xf32, #tpu.memory_space<vmem>>, %arg4: memref<24x96xf32, #tpu.memory_space<vmem>>, %arg5: memref<8x32xf32, #tpu.memory_space<vmem>>) attributes {dimension_semantics = [], scalar_prefetch = 0 : i64, scratch_operands = 0 : i64, tpu.core_type = #tpu.core_type<tc>} {
    %c0 = arith.constant 0 : index
    %c0_0 = arith.constant 0 : index
    %0 = vector.load %arg0[%c0, %c0_0] : memref<8x16xf32, #tpu.memory_space<vmem>>, vector<8x16xf32>
    %c0_1 = arith.constant 0 : index
    %c0_2 = arith.constant 0 : index
    %1 = vector.load %arg3[%c0_1, %c0_2] : memref<216x96xf32, #tpu.memory_space<vmem>>, vector<16x96xf32>
    %cst = arith.constant dense<0.000000e+00> : vector<8x96xf32>
    %2 = tpu.matmul %0, %1, %cst {dimension_numbers = #tpu.dot_dimension_numbers<[1], [0], [0], [1], [0, 0, 1, 1], [], []>} : vector<8x16xf32>, vector<16x96xf32>, vector<8x96xf32> -> vector<8x96xf32>
    %c0_3 = arith.constant 0 : index
    %c0_4 = arith.constant 0 : index
    %3 = vector.load %arg1[%c0_3, %c0_4] : memref<8x24xf32, #tpu.memory_space<vmem>>, vector<8x24xf32>
    %c16 = arith.constant 16 : index
    %c0_5 = arith.constant 0 : index
    %4 = vector.load %arg3[%c16, %c0_5] : memref<216x96xf32, #tpu.memory_space<vmem>>, vector<24x96xf32>
    %cst_6 = arith.constant dense<0.000000e+00> : vector<8x96xf32>
    %5 = tpu.matmul %3, %4, %cst_6 {dimension_numbers = #tpu.dot_dimension_numbers<[1], [0], [0], [1], [0, 0, 1, 1], [], []>} : vector<8x24xf32>, vector<24x96xf32>, vector<8x96xf32> -> vector<8x96xf32>
    %6 = arith.addf %2, %5 : vector<8x96xf32>
    %c0_7 = arith.constant 0 : index
    %c0_8 = arith.constant 0 : index
    %7 = vector.load %arg2[%c0_7, %c0_8] : memref<8x32xf32, #tpu.memory_space<vmem>>, vector<8x32xf32>
    %c40 = arith.constant 40 : index
    %c0_9 = arith.constant 0 : index
    %8 = vector.load %arg3[%c40, %c0_9] : memref<216x96xf32, #tpu.memory_space<vmem>>, vector<32x96xf32>
    %cst_10 = arith.constant dense<0.000000e+00> : vector<8x96xf32>
    %9 = tpu.matmul %7, %8, %cst_10 {dimension_numbers = #tpu.dot_dimension_numbers<[1], [0], [0], [1], [0, 0, 1, 1], [], []>} : vector<8x32xf32>, vector<32x96xf32>, vector<8x96xf32> -> vector<8x96xf32>
    %10 = arith.addf %6, %9 : vector<8x96xf32>
    %c0_11 = arith.constant 0 : index
    %c0_12 = arith.constant 0 : index
    %11 = vector.load %arg4[%c0_11, %c0_12] : memref<24x96xf32, #tpu.memory_space<vmem>>, vector<1x96xf32>
    %c1 = arith.constant 1 : index
    %c0_13 = arith.constant 0 : index
    %12 = vector.load %arg4[%c1, %c0_13] : memref<24x96xf32, #tpu.memory_space<vmem>>, vector<1x96xf32>
    %c2 = arith.constant 2 : index
    %c0_14 = arith.constant 0 : index
    %13 = vector.load %arg4[%c2, %c0_14] : memref<24x96xf32, #tpu.memory_space<vmem>>, vector<1x96xf32>
    %cst_15 = arith.constant dense<0.000000e+00> : vector<96xf32>
    %14 = vector.multi_reduction <add>, %10, %cst_15 [0] : vector<8x96xf32> to vector<96xf32>
    %15 = vector.shape_cast %14 : vector<96xf32> to vector<1x96xf32>
    %cst_16 = arith.constant 8.000000e+00 : f32
    %16 = vector.broadcast %cst_16 : f32 to vector<1x96xf32>
    %17 = arith.divf %15, %16 : vector<1x96xf32>
    %18 = vector.broadcast %17 : vector<1x96xf32> to vector<8x96xf32>
    %19 = arith.subf %10, %18 : vector<8x96xf32>
    %20 = arith.mulf %19, %19 : vector<8x96xf32>
    %cst_17 = arith.constant dense<0.000000e+00> : vector<96xf32>
    %21 = vector.multi_reduction <add>, %20, %cst_17 [0] : vector<8x96xf32> to vector<96xf32>
    %22 = vector.shape_cast %21 : vector<96xf32> to vector<1x96xf32>
    %cst_18 = arith.constant 8.000000e+00 : f32
    %23 = vector.broadcast %cst_18 : f32 to vector<1x96xf32>
    %24 = arith.divf %22, %23 : vector<1x96xf32>
    %cst_19 = arith.constant 9.99999974E-6 : f32
    %25 = vector.broadcast %cst_19 : f32 to vector<1x96xf32>
    %26 = arith.addf %24, %25 : vector<1x96xf32>
    %27 = math.rsqrt %26 : vector<1x96xf32>
    %28 = arith.mulf %11, %27 : vector<1x96xf32>
    %29 = vector.broadcast %28 : vector<1x96xf32> to vector<8x96xf32>
    %30 = arith.mulf %19, %29 : vector<8x96xf32>
    %31 = vector.broadcast %12 : vector<1x96xf32> to vector<8x96xf32>
    %32 = arith.addf %30, %31 : vector<8x96xf32>
    %cst_20 = arith.constant 0.000000e+00 : f32
    %33 = vector.broadcast %cst_20 : f32 to vector<8x96xf32>
    %34 = arith.cmpf oge, %32, %33 : vector<8x96xf32>
    %35 = vector.broadcast %13 : vector<1x96xf32> to vector<8x96xf32>
    %36 = arith.mulf %35, %32 : vector<8x96xf32>
    %37 = arith.select %34, %32, %36 : vector<8x96xi1>, vector<8x96xf32>
    %c72 = arith.constant 72 : index
    %c0_21 = arith.constant 0 : index
    %38 = vector.load %arg3[%c72, %c0_21] : memref<216x96xf32, #tpu.memory_space<vmem>>, vector<96x48xf32>
    %cst_22 = arith.constant dense<0.000000e+00> : vector<8x48xf32>
    %39 = tpu.matmul %37, %38, %cst_22 {dimension_numbers = #tpu.dot_dimension_numbers<[1], [0], [0], [1], [0, 0, 1, 1], [], []>} : vector<8x96xf32>, vector<96x48xf32>, vector<8x48xf32> -> vector<8x48xf32>
    %c8 = arith.constant 8 : index
    %c0_23 = arith.constant 0 : index
    %40 = vector.load %arg4[%c8, %c0_23] : memref<24x96xf32, #tpu.memory_space<vmem>>, vector<1x48xf32>
    %c9 = arith.constant 9 : index
    %c0_24 = arith.constant 0 : index
    %41 = vector.load %arg4[%c9, %c0_24] : memref<24x96xf32, #tpu.memory_space<vmem>>, vector<1x48xf32>
    %c10 = arith.constant 10 : index
    %c0_25 = arith.constant 0 : index
    %42 = vector.load %arg4[%c10, %c0_25] : memref<24x96xf32, #tpu.memory_space<vmem>>, vector<1x48xf32>
    %cst_26 = arith.constant dense<0.000000e+00> : vector<48xf32>
    %43 = vector.multi_reduction <add>, %39, %cst_26 [0] : vector<8x48xf32> to vector<48xf32>
    %44 = vector.shape_cast %43 : vector<48xf32> to vector<1x48xf32>
    %cst_27 = arith.constant 8.000000e+00 : f32
    %45 = vector.broadcast %cst_27 : f32 to vector<1x48xf32>
    %46 = arith.divf %44, %45 : vector<1x48xf32>
    %47 = vector.broadcast %46 : vector<1x48xf32> to vector<8x48xf32>
    %48 = arith.subf %39, %47 : vector<8x48xf32>
    %49 = arith.mulf %48, %48 : vector<8x48xf32>
    %cst_28 = arith.constant dense<0.000000e+00> : vector<48xf32>
    %50 = vector.multi_reduction <add>, %49, %cst_28 [0] : vector<8x48xf32> to vector<48xf32>
    %51 = vector.shape_cast %50 : vector<48xf32> to vector<1x48xf32>
    %cst_29 = arith.constant 8.000000e+00 : f32
    %52 = vector.broadcast %cst_29 : f32 to vector<1x48xf32>
    %53 = arith.divf %51, %52 : vector<1x48xf32>
    %cst_30 = arith.constant 9.99999974E-6 : f32
    %54 = vector.broadcast %cst_30 : f32 to vector<1x48xf32>
    %55 = arith.addf %53, %54 : vector<1x48xf32>
    %56 = math.rsqrt %55 : vector<1x48xf32>
    %57 = arith.mulf %40, %56 : vector<1x48xf32>
    %58 = vector.broadcast %57 : vector<1x48xf32> to vector<8x48xf32>
    %59 = arith.mulf %48, %58 : vector<8x48xf32>
    %60 = vector.broadcast %41 : vector<1x48xf32> to vector<8x48xf32>
    %61 = arith.addf %59, %60 : vector<8x48xf32>
    %cst_31 = arith.constant 0.000000e+00 : f32
    %62 = vector.broadcast %cst_31 : f32 to vector<8x48xf32>
    %63 = arith.cmpf oge, %61, %62 : vector<8x48xf32>
    %64 = vector.broadcast %42 : vector<1x48xf32> to vector<8x48xf32>
    %65 = arith.mulf %64, %61 : vector<8x48xf32>
    %66 = arith.select %63, %61, %65 : vector<8x48xi1>, vector<8x48xf32>
    %c168 = arith.constant 168 : index
    %c0_32 = arith.constant 0 : index
    %67 = vector.load %arg3[%c168, %c0_32] : memref<216x96xf32, #tpu.memory_space<vmem>>, vector<48x32xf32>
    %cst_33 = arith.constant dense<0.000000e+00> : vector<8x32xf32>
    %68 = tpu.matmul %66, %67, %cst_33 {dimension_numbers = #tpu.dot_dimension_numbers<[1], [0], [0], [1], [0, 0, 1, 1], [], []>} : vector<8x48xf32>, vector<48x32xf32>, vector<8x32xf32> -> vector<8x32xf32>
    %c16_34 = arith.constant 16 : index
    %c0_35 = arith.constant 0 : index
    %69 = vector.load %arg4[%c16_34, %c0_35] : memref<24x96xf32, #tpu.memory_space<vmem>>, vector<1x32xf32>
    %c17 = arith.constant 17 : index
    %c0_36 = arith.constant 0 : index
    %70 = vector.load %arg4[%c17, %c0_36] : memref<24x96xf32, #tpu.memory_space<vmem>>, vector<1x32xf32>
    %c18 = arith.constant 18 : index
    %c0_37 = arith.constant 0 : index
    %71 = vector.load %arg4[%c18, %c0_37] : memref<24x96xf32, #tpu.memory_space<vmem>>, vector<1x32xf32>
    %cst_38 = arith.constant dense<0.000000e+00> : vector<32xf32>
    %72 = vector.multi_reduction <add>, %68, %cst_38 [0] : vector<8x32xf32> to vector<32xf32>
    %73 = vector.shape_cast %72 : vector<32xf32> to vector<1x32xf32>
    %cst_39 = arith.constant 8.000000e+00 : f32
    %74 = vector.broadcast %cst_39 : f32 to vector<1x32xf32>
    %75 = arith.divf %73, %74 : vector<1x32xf32>
    %76 = vector.broadcast %75 : vector<1x32xf32> to vector<8x32xf32>
    %77 = arith.subf %68, %76 : vector<8x32xf32>
    %78 = arith.mulf %77, %77 : vector<8x32xf32>
    %cst_40 = arith.constant dense<0.000000e+00> : vector<32xf32>
    %79 = vector.multi_reduction <add>, %78, %cst_40 [0] : vector<8x32xf32> to vector<32xf32>
    %80 = vector.shape_cast %79 : vector<32xf32> to vector<1x32xf32>
    %cst_41 = arith.constant 8.000000e+00 : f32
    %81 = vector.broadcast %cst_41 : f32 to vector<1x32xf32>
    %82 = arith.divf %80, %81 : vector<1x32xf32>
    %cst_42 = arith.constant 9.99999974E-6 : f32
    %83 = vector.broadcast %cst_42 : f32 to vector<1x32xf32>
    %84 = arith.addf %82, %83 : vector<1x32xf32>
    %85 = math.rsqrt %84 : vector<1x32xf32>
    %86 = arith.mulf %69, %85 : vector<1x32xf32>
    %87 = vector.broadcast %86 : vector<1x32xf32> to vector<8x32xf32>
    %88 = arith.mulf %77, %87 : vector<8x32xf32>
    %89 = vector.broadcast %70 : vector<1x32xf32> to vector<8x32xf32>
    %90 = arith.addf %88, %89 : vector<8x32xf32>
    %cst_43 = arith.constant 0.000000e+00 : f32
    %91 = vector.broadcast %cst_43 : f32 to vector<8x32xf32>
    %92 = arith.cmpf oge, %90, %91 : vector<8x32xf32>
    %93 = vector.broadcast %71 : vector<1x32xf32> to vector<8x32xf32>
    %94 = arith.mulf %93, %90 : vector<8x32xf32>
    %95 = arith.select %92, %90, %94 : vector<8x32xi1>, vector<8x32xf32>
    %c0_44 = arith.constant 0 : index
    %c0_45 = arith.constant 0 : index
    %96 = vector.load %arg5[%c0_44, %c0_45] : memref<8x32xf32, #tpu.memory_space<vmem>>, vector<8x32xf32>
    tpu.vector_store %arg5[%c0_44, %c0_45], %95 {strides = array<i32>} : memref<8x32xf32, #tpu.memory_space<vmem>>, vector<8x32xf32>,
    return
  }
}

</mosaic_0001>

<llo_original>
// kernel: forward.1
$region0: #{forward.1}
  #allocation0 [shape = 'u32[]', space=smem, size = 0x4, offset = 0x4, fixed_abs, tag = 'smem constant byte address 0x4 - core index']
  #allocation1 [shape = 'u32[144,128]{1,0:T(1,128)}', space=vmem, size = 0x12000, scoped, tag = 'internal scratch']
  %s0 = inlined_call_operand.vmem [shape: f32[8,16], index: 0, kind: input, shape index: {}]
  %s1 = inlined_call_operand.vmem [shape: f32[8,24], index: 1, kind: input, shape index: {}]
  %s2 = inlined_call_operand.vmem [shape: f32[8,32], index: 2, kind: input, shape index: {}]
  %s3 = inlined_call_operand.vmem [shape: f32[216,96], index: 3, kind: input, shape index: {}]
  %s4 = inlined_call_operand.vmem [shape: f32[24,96], index: 4, kind: input, shape index: {}]
  %s5 = inlined_call_operand.hbm [shape: f32[8,32], index: 5, kind: output, shape index: {}]
  %s6 = sld [smem:[#allocation0]]
  $region30: #{forward.1} parent=0
    _
  %s8 = ssub.s32 1, %s6
  %s9 = scalar_select 0, %s8, %s6
  $region1: #{forward.1} parent=0
    #allocation2 [shape = 'u8[4096]{0}', space=vmem, size = 0x1000, scoped, tag = 'output window, operand 0, single buffered']
    #allocation3 [shape = 's32[1]{0}', space=sflag, size = 0x4, scoped, tag = 'scoped memory for forward.1']
    %10 = vsyncpa [#allocation3], 0
    // Predicated region
    $region2: #{forward.1} parent=1 // pred_check
      _
    $region3: #{forward.1} parent=1 // pred_check_branch
      %12 = sbr.rel (0) target = $region5
    $region4: #{forward.1} parent=1 // pred_region
      _
    $region5: #{forward.1} parent=1 // pred_fallthru
      _
    // Predicated region
    $region6: #{forward.1} parent=1 // pred_check
      _
    $region7: #{forward.1} parent=1 // pred_check_branch
      %14 = sbr.rel (0) target = $region9
    $region8: #{forward.1} parent=1 // pred_region
      _
    $region9: #{forward.1} parent=1 // pred_fallthru
      _
    // Predicated region
    $region10: #{forward.1} parent=1 // pred_check
      _
    $region11: #{forward.1} parent=1 // pred_check_branch
      %16 = sbr.rel (0) target = $region13
    $region12: #{forward.1} parent=1 // pred_region
      _
    $region13: #{forward.1} parent=1 // pred_fallthru
      _
    // Predicated region
    $region14: #{forward.1} parent=1 // pred_check
      _
    $region15: #{forward.1} parent=1 // pred_check_branch
      %18 = sbr.rel (0) target = $region17
    $region16: #{forward.1} parent=1 // pred_region
      _
    $region17: #{forward.1} parent=1 // pred_fallthru
      _
    // Predicated region
    $region18: #{forward.1} parent=1 // pred_check
      _
    $region19: #{forward.1} parent=1 // pred_check_branch
      %20 = sbr.rel (0) target = $region21
    $region20: #{forward.1} parent=1 // pred_region
      _
    $region21: #{forward.1} parent=1 // pred_fallthru
      _
    %v21 = vld [vmem:[%s0] sm:$0xff]
    %v22 = vld [vmem:[%s3] sm:$0xff]
    %v23 = vld [vmem:[%s3 + $0x8] sm:$0xff]
    %v24 = vld [vmem:[%s1] sm:$0xff]
    %v25 = vld [vmem:[%s3 + $0x10] sm:$0xff]
    %v26 = vld [vmem:[%s3 + $0x18] sm:$0xff]
    %v27 = vld [vmem:[%s3 + $0x20] sm:$0xff]
    %vm28 = vcmask 195584
    %v30 = vsel %vm28, %v24, 0
    %32 = vmatprep.subr.mxu0 0.0
    %33 = vmatpush1.msra.mxu0 %v25
    %34 = vmatprep.subr.mxu0 0.0
    %35 = vmatpush1.msra.mxu0 %v26
    %36 = vmatprep.subr.mxu0 0.0
    %37 = vmatpush1.msra.mxu0 %v27
    %38 = vmatprep.subr.mxu0 0.0
    %39 = vmatpush1.msra.mxu0 0.0
    %40 = vmatprep.subr.mxu0 0.0
    %41 = vmatpush1.msra.mxu0 0.0
    %42 = vmatprep.subr.mxu0 0.0
    %43 = vmatpush1.msra.mxu0 0.0
    %44 = vmatprep.subr.mxu0 0.0
    %45 = vmatpush1.msra.mxu0 0.0
    %46 = vmatprep.subr.mxu0 0.0
    %47 = vmatpush1.msra.mxu0 0.0
    %48 = vmatprep.subr.mxu0 0.0
    %49 = vmatpush1.msra.mxu0 0.0
    %50 = vmatprep.subr.mxu0 0.0
    %51 = vmatpush1.msra.mxu0 0.0
    %52 = vmatprep.subr.mxu0 0.0
    %53 = vmatpush1.msra.mxu0 0.0
    %54 = vmatprep.subr.mxu0 0.0
    %55 = vmatpush1.msra.mxu0 0.0
    %56 = vmatprep.subr.mxu0 0.0
    %57 = vmatpush1.msra.mxu0 0.0
    %58 = vmatprep.subr.mxu0 0.0
    %59 = vmatpush1.msra.mxu0 0.0
    %60 = vmatprep.subr.mxu0 0.0
    %61 = vmatpush1.msra.mxu0 0.0
    %62 = vmatprep.subr.mxu0 0.0
    %63 = vmatpush1.msra.mxu0 0.0
    %64 = vmatprep.subr.mxu0 0.0
    %65 = vmatpush1.msra.mxu0 0.0
    %66 = vmatprep.subr.mxu0 0.0
    %67 = vmatpush1.msra.mxu0 0.0
    %68 = vmatprep.subr.mxu0 0.0
    %69 = vmatpush1.msra.mxu0 0.0
    %70 = vmatprep.subr.mxu0 0.0
    %71 = vmatpush1.msra.mxu0 0.0
    %72 = vmatprep.subr.mxu0 0.0
    %73 = vmatpush1.msra.mxu0 0.0
    %74 = vmatprep.subr.mxu0 0.0
    %75 = vmatpush1.msra.mxu0 0.0
    %76 = vmatprep.subr.mxu0 0.0
    %77 = vmatpush1.msra.mxu0 0.0
    %78 = vmatprep.subr.mxu0 0.0
    %79 = vmatpush1.msra.mxu0 0.0
    %80 = vmatprep.subr.mxu0 0.0
    %81 = vmatpush1.msra.mxu0 0.0
    %82 = vmatprep.subr.mxu0 0.0
    %83 = vmatpush1.msra.mxu0 0.0
    %84 = vmatprep.subr.mxu0 0.0
    %85 = vmatpush1.msra.mxu0 0.0
    %86 = vmatprep.subr.mxu0 0.0
    %87 = vmatpush1.msra.mxu0 0.0
    %88 = vmatprep.subr.mxu0 0.0
    %89 = vmatpush1.msra.mxu0 0.0
    %90 = vmatprep.subr.mxu0 0.0
    %91 = vmatpush1.msra.mxu0 0.0
    %92 = vmatprep.subr.mxu0 0.0
    %93 = vmatpush1.msra.mxu0 0.0
    %94 = vmatprep.subr.mxu0 0.0
    %95 = vmatpush1.msra.mxu0 0.0
    %96 = vmatprep.mubr.f32.mxu0 0.0
    %97 = vmatmul.mubr.f32.gmra.mrb[0].mxu0 %v30
    %v98 = vpop.f32.mrb[0].mxu0
    %v99 = vadd.f32 0.0, %v98
    %v100 = vpop.f32.mrb[0].mxu0
    %101 = vdwg.mxu0
    %vm102 = vcmask 130048
    %v104 = vsel %vm102, %v21, 0
    %106 = vmatprep.subr.mxu0 0.0
    %107 = vmatpush1.msra.mxu0 %v22
    %108 = vmatprep.subr.mxu0 0.0
    %109 = vmatpush1.msra.mxu0 %v23
    %110 = vmatprep.subr.mxu0 0.0
    %111 = vmatpush1.msra.mxu0 0.0
    %112 = vmatprep.subr.mxu0 0.0
    %113 = vmatpush1.msra.mxu0 0.0
    %114 = vmatprep.subr.mxu0 0.0
    %115 = vmatpush1.msra.mxu0 0.0
    %116 = vmatprep.subr.mxu0 0.0
    %117 = vmatpush1.msra.mxu0 0.0
    %118 = vmatprep.subr.mxu0 0.0
    %119 = vmatpush1.msra.mxu0 0.0
    %120 = vmatprep.subr.mxu0 0.0
    %121 = vmatpush1.msra.mxu0 0.0
    %122 = vmatprep.subr.mxu0 0.0
    %123 = vmatpush1.msra.mxu0 0.0
    %124 = vmatprep.subr.mxu0 0.0
    %125 = vmatpush1.msra.mxu0 0.0
    %126 = vmatprep.subr.mxu0 0.0
    %127 = vmatpush1.msra.mxu0 0.0
    %128 = vmatprep.subr.mxu0 0.0
    %129 = vmatpush1.msra.mxu0 0.0
    %130 = vmatprep.subr.mxu0 0.0
    %131 = vmatpush1.msra.mxu0 0.0
    %132 = vmatprep.subr.mxu0 0.0
    %133 = vmatpush1.msra.mxu0 0.0
    %134 = vmatprep.subr.mxu0 0.0
    %135 = vmatpush1.msra.mxu0 0.0
    %136 = vmatprep.subr.mxu0 0.0
    %137 = vmatpush1.msra.mxu0 0.0
    %138 = vmatprep.subr.mxu0 0.0
    %139 = vmatpush1.msra.mxu0 0.0
    %140 = vmatprep.subr.mxu0 0.0
    %141 = vmatpush1.msra.mxu0 0.0
    %142 = vmatprep.subr.mxu0 0.0
    %143 = vmatpush1.msra.mxu0 0.0
    %144 = vmatprep.subr.mxu0 0.0
    %145 = vmatpush1.msra.mxu0 0.0
    %146 = vmatprep.subr.mxu0 0.0
    %147 = vmatpush1.msra.mxu0 0.0
    %148 = vmatprep.subr.mxu0 0.0
    %149 = vmatpush1.msra.mxu0 0.0
    %150 = vmatprep.subr.mxu0 0.0
    %151 = vmatpush1.msra.mxu0 0.0
    %152 = vmatprep.subr.mxu0 0.0
    %153 = vmatpush1.msra.mxu0 0.0
    %154 = vmatprep.subr.mxu0 0.0
    %155 = vmatpush1.msra.mxu0 0.0
    %156 = vmatprep.subr.mxu0 0.0
    %157 = vmatpush1.msra.mxu0 0.0
    %158 = vmatprep.subr.mxu0 0.0
    %159 = vmatpush1.msra.mxu0 0.0
    %160 = vmatprep.subr.mxu0 0.0
    %161 = vmatpush1.msra.mxu0 0.0
    %162 = vmatprep.subr.mxu0 0.0
    %163 = vmatpush1.msra.mxu0 0.0
    %164 = vmatprep.subr.mxu0 0.0
    %165 = vmatpush1.msra.mxu0 0.0
    %166 = vmatprep.subr.mxu0 0.0
    %167 = vmatpush1.msra.mxu0 0.0
    %168 = vmatprep.subr.mxu0 0.0
    %169 = vmatpush1.msra.mxu0 0.0
    %170 = vmatprep.mubr.f32.mxu0 0.0
    %171 = vmatmul.mubr.f32.gmra.mrb[0].mxu0 %v104
    %v172 = vpop.f32.mrb[0].mxu0
    %v173 = vadd.f32 %v99, %v172
    %v174 = vpop.f32.mrb[0].mxu0
    %175 = vdwg.mxu0
    %v176 = vld [vmem:[%s2] sm:$0xff]
    %v177 = vld [vmem:[%s3 + $0x28] sm:$0xff]
    %v178 = vld [vmem:[%s3 + $0x30] sm:$0xff]
    %v179 = vld [vmem:[%s3 + $0x38] sm:$0xff]
    %v180 = vld [vmem:[%s3 + $0x40] sm:$0xff]
    %vm181 = vcmask 261120
    %v183 = vsel %vm181, %v176, 0
    %185 = vmatprep.subr.mxu0 0.0
    %186 = vmatpush1.msra.mxu0 %v177
    %187 = vmatprep.subr.mxu0 0.0
    %188 = vmatpush1.msra.mxu0 %v178
    %189 = vmatprep.subr.mxu0 0.0
    %190 = vmatpush1.msra.mxu0 %v179
    %191 = vmatprep.subr.mxu0 0.0
    %192 = vmatpush1.msra.mxu0 %v180
    %193 = vmatprep.subr.mxu0 0.0
    %194 = vmatpush1.msra.mxu0 0.0
    %195 = vmatprep.subr.mxu0 0.0
    %196 = vmatpush1.msra.mxu0 0.0
    %197 = vmatprep.subr.mxu0 0.0
    %198 = vmatpush1.msra.mxu0 0.0
    %199 = vmatprep.subr.mxu0 0.0
    %200 = vmatpush1.msra.mxu0 0.0
    %201 = vmatprep.subr.mxu0 0.0
    %202 = vmatpush1.msra.mxu0 0.0
    %203 = vmatprep.subr.mxu0 0.0
    %204 = vmatpush1.msra.mxu0 0.0
    %205 = vmatprep.subr.mxu0 0.0
    %206 = vmatpush1.msra.mxu0 0.0
    %207 = vmatprep.subr.mxu0 0.0
    %208 = vmatpush1.msra.mxu0 0.0
    %209 = vmatprep.subr.mxu0 0.0
    %210 = vmatpush1.msra.mxu0 0.0
    %211 = vmatprep.subr.mxu0 0.0
    %212 = vmatpush1.msra.mxu0 0.0
    %213 = vmatprep.subr.mxu0 0.0
    %214 = vmatpush1.msra.mxu0 0.0
    %215 = vmatprep.subr.mxu0 0.0
    %216 = vmatpush1.msra.mxu0 0.0
    %217 = vmatprep.subr.mxu0 0.0
    %218 = vmatpush1.msra.mxu0 0.0
    %219 = vmatprep.subr.mxu0 0.0
    %220 = vmatpush1.msra.mxu0 0.0
    %221 = vmatprep.subr.mxu0 0.0
    %222 = vmatpush1.msra.mxu0 0.0
    %223 = vmatprep.subr.mxu0 0.0
    %224 = vmatpush1.msra.mxu0 0.0
    %225 = vmatprep.subr.mxu0 0.0
    %226 = vmatpush1.msra.mxu0 0.0
    %227 = vmatprep.subr.mxu0 0.0
    %228 = vmatpush1.msra.mxu0 0.0
    %229 = vmatprep.subr.mxu0 0.0
    %230 = vmatpush1.msra.mxu0 0.0
    %231 = vmatprep.subr.mxu0 0.0
    %232 = vmatpush1.msra.mxu0 0.0
    %233 = vmatprep.subr.mxu0 0.0
    %234 = vmatpush1.msra.mxu0 0.0
    %235 = vmatprep.subr.mxu0 0.0
    %236 = vmatpush1.msra.mxu0 0.0
    %237 = vmatprep.subr.mxu0 0.0
    %238 = vmatpush1.msra.mxu0 0.0
    %239 = vmatprep.subr.mxu0 0.0
    %240 = vmatpush1.msra.mxu0 0.0
    %241 = vmatprep.subr.mxu0 0.0
    %242 = vmatpush1.msra.mxu0 0.0
    %243 = vmatprep.subr.mxu0 0.0
    %244 = vmatpush1.msra.mxu0 0.0
    %245 = vmatprep.subr.mxu0 0.0
    %246 = vmatpush1.msra.mxu0 0.0
    %247 = vmatprep.subr.mxu0 0.0
    %248 = vmatpush1.msra.mxu0 0.0
    %249 = vmatprep.mubr.f32.mxu0 0.0
    %250 = vmatmul.mubr.f32.gmra.mrb[0].mxu0 %v183
    %v251 = vpop.f32.mrb[0].mxu0
    %v252 = vadd.f32 0.0, %v251
    %v253 = vpop.f32.mrb[0].mxu0
    %254 = vdwg.mxu0
    %v255 = vadd.f32 %v173, %v252
    %v256 = vld [vmem:[%s4] sm:$0x1]
    %v257 = vld [vmem:[%s4 + $0x1] sm:$0x1]
    %v258 = vld [vmem:[%s4 + $0x2] sm:$0x1]
    %vm259 = vcmask 785408
    %v260 = vsel %vm259, %v255, 0.0
    %v261 = vrot.slane %v260, 4
    %v262 = vadd.f32 %v260, %v261
    %v263 = vrot.slane %v262, 2
    %v264 = vadd.f32 %v262, %v263
    %v265 = vrot.slane %v264, 1
    %v266 = vadd.f32 %v264, %v265
    %v267 = vrcp.pop 8.0
    %v268 = vmul.f32 %v266, %v267
    %v269 = vsub.f32 %v255, %v268
    %v270 = vmul.f32 %v269, %v269
    %v271 = vsel %vm259, %v270, 0.0
    %v272 = vrot.slane %v271, 4
    %v273 = vadd.f32 %v271, %v272
    %v274 = vrot.slane %v273, 2
    %v275 = vadd.f32 %v273, %v274
    %v276 = vrot.slane %v275, 1
    %v277 = vadd.f32 %v275, %v276
    %v278 = vmul.f32 %v277, %v267
    %v279 = vadd.f32 %v278, 1e-05
    %v280 = vrsqrt.pop %v279
    %v281 = vmul.f32 %v256, %v280
    %v282 = vlaneseq
    %v283 = vshrl.u32 %v282, 7
    %v284 = vsub.s32 0, %v283
    %v285 = vrot.slane %v281, %v284
    %v286 = vmul.f32 %v269, %v285
    %v287 = vlaneseq
    %v288 = vshrl.u32 %v287, 7
    %v289 = vsub.s32 0, %v288
    %v290 = vrot.slane %v257, %v289
    %v291 = vadd.f32 %v286, %v290
    %vm292 = vcmp.ge.f32.partialorder %v291, 0.0
    %v293 = vlaneseq
    %v294 = vshrl.u32 %v293, 7
    %v295 = vsub.s32 0, %v294
    %v296 = vrot.slane %v258, %v295
    %v297 = vmul.f32 %v296, %v291
    %v298 = vsel %vm292, %v291, %v297
    %v299 = vld [vmem:[%s3 + $0x48] sm:$0xff]
    %v300 = vld [vmem:[%s3 + $0x50] sm:$0xff]
    %v301 = vld [vmem:[%s3 + $0x58] sm:$0xff]
    %v302 = vld [vmem:[%s3 + $0x60] sm:$0xff]
    %v303 = vld [vmem:[%s3 + $0x68] sm:$0xff]
    %v304 = vld [vmem:[%s3 + $0x70] sm:$0xff]
    %v305 = vld [vmem:[%s3 + $0x78] sm:$0xff]
    %v306 = vld [vmem:[%s3 + $0x80] sm:$0xff]
    %v307 = vld [vmem:[%s3 + $0x88] sm:$0xff]
    %v308 = vld [vmem:[%s3 + $0x90] sm:$0xff]
    %v309 = vld [vmem:[%s3 + $0x98] sm:$0xff]
    %v310 = vld [vmem:[%s3 + $0xa0] sm:$0xff]
    %v312 = vsel %vm259, %v298, 0
    %314 = vmatprep.subr.mxu0 0.0
    %315 = vmatpush1.msra.mxu0 %v299
    %316 = vmatprep.subr.mxu0 0.0
    %317 = vmatpush1.msra.mxu0 %v300
    %318 = vmatprep.subr.mxu0 0.0
    %319 = vmatpush1.msra.mxu0 %v301
    %320 = vmatprep.subr.mxu0 0.0
    %321 = vmatpush1.msra.mxu0 %v302
    %322 = vmatprep.subr.mxu0 0.0
    %323 = vmatpush1.msra.mxu0 %v303
    %324 = vmatprep.subr.mxu0 0.0
    %325 = vmatpush1.msra.mxu0 %v304
    %326 = vmatprep.subr.mxu0 0.0
    %327 = vmatpush1.msra.mxu0 %v305
    %328 = vmatprep.subr.mxu0 0.0
    %329 = vmatpush1.msra.mxu0 %v306
    %330 = vmatprep.subr.mxu0 0.0
    %331 = vmatpush1.msra.mxu0 %v307
    %332 = vmatprep.subr.mxu0 0.0
    %333 = vmatpush1.msra.mxu0 %v308
    %334 = vmatprep.subr.mxu0 0.0
    %335 = vmatpush1.msra.mxu0 %v309
    %336 = vmatprep.subr.mxu0 0.0
    %337 = vmatpush1.msra.mxu0 %v310
    %338 = vmatprep.subr.mxu0 0.0
    %339 = vmatpush1.msra.mxu0 0.0
    %340 = vmatprep.subr.mxu0 0.0
    %341 = vmatpush1.msra.mxu0 0.0
    %342 = vmatprep.subr.mxu0 0.0
    %343 = vmatpush1.msra.mxu0 0.0
    %344 = vmatprep.subr.mxu0 0.0
    %345 = vmatpush1.msra.mxu0 0.0
    %346 = vmatprep.subr.mxu0 0.0
    %347 = vmatpush1.msra.mxu0 0.0
    %348 = vmatprep.subr.mxu0 0.0
    %349 = vmatpush1.msra.mxu0 0.0
    %350 = vmatprep.subr.mxu0 0.0
    %351 = vmatpush1.msra.mxu0 0.0
    %352 = vmatprep.subr.mxu0 0.0
    %353 = vmatpush1.msra.mxu0 0.0
    %354 = vmatprep.subr.mxu0 0.0
    %355 = vmatpush1.msra.mxu0 0.0
    %356 = vmatprep.subr.mxu0 0.0
    %357 = vmatpush1.msra.mxu0 0.0
    %358 = vmatprep.subr.mxu0 0.0
    %359 = vmatpush1.msra.mxu0 0.0
    %360 = vmatprep.subr.mxu0 0.0
    %361 = vmatpush1.msra.mxu0 0.0
    %362 = vmatprep.subr.mxu0 0.0
    %363 = vmatpush1.msra.mxu0 0.0
    %364 = vmatprep.subr.mxu0 0.0
    %365 = vmatpush1.msra.mxu0 0.0
    %366 = vmatprep.subr.mxu0 0.0
    %367 = vmatpush1.msra.mxu0 0.0
    %368 = vmatprep.subr.mxu0 0.0
    %369 = vmatpush1.msra.mxu0 0.0
    %370 = vmatprep.subr.mxu0 0.0
    %371 = vmatpush1.msra.mxu0 0.0
    %372 = vmatprep.subr.mxu0 0.0
    %373 = vmatpush1.msra.mxu0 0.0
    %374 = vmatprep.subr.mxu0 0.0
    %375 = vmatpush1.msra.mxu0 0.0
    %376 = vmatprep.subr.mxu0 0.0
    %377 = vmatpush1.msra.mxu0 0.0
    %378 = vmatprep.mubr.f32.mxu0 0.0
    %379 = vmatmul.mubr.f32.gmra.mrb[0].mxu0 %v312
    %v380 = vpop.f32.mrb[0].mxu0
    %v381 = vadd.f32 0.0, %v380
    %v382 = vpop.f32.mrb[0].mxu0
    %383 = vdwg.mxu0
    %v384 = vld [vmem:[%s4 + $0x8] sm:$0x1]
    %v385 = vld [vmem:[%s4 + $0x9] sm:$0x1]
    %v386 = vld [vmem:[%s4 + $0xa] sm:$0x1]
    %vm387 = vcmask 392192
    %v388 = vsel %vm387, %v381, 0.0
    %v389 = vrot.slane %v388, 4
    %v390 = vadd.f32 %v388, %v389
    %v391 = vrot.slane %v390, 2
    %v392 = vadd.f32 %v390, %v391
    %v393 = vrot.slane %v392, 1
    %v394 = vadd.f32 %v392, %v393
    %v395 = vmul.f32 %v394, %v267
    %v396 = vsub.f32 %v381, %v395
    %v397 = vmul.f32 %v396, %v396
    %v398 = vsel %vm387, %v397, 0.0
    %v399 = vrot.slane %v398, 4
    %v400 = vadd.f32 %v398, %v399
    %v401 = vrot.slane %v400, 2
    %v402 = vadd.f32 %v400, %v401
    %v403 = vrot.slane %v402, 1
    %v404 = vadd.f32 %v402, %v403
    %v405 = vmul.f32 %v404, %v267
    %v406 = vadd.f32 %v405, 1e-05
    %v407 = vrsqrt.pop %v406
    %v408 = vmul.f32 %v384, %v407
    %v409 = vlaneseq
    %v410 = vshrl.u32 %v409, 7
    %v411 = vsub.s32 0, %v410
    %v412 = vrot.slane %v408, %v411
    %v413 = vmul.f32 %v396, %v412
    %v414 = vlaneseq
    %v415 = vshrl.u32 %v414, 7
    %v416 = vsub.s32 0, %v415
    %v417 = vrot.slane %v385, %v416
    %v418 = vadd.f32 %v413, %v417
    %vm419 = vcmp.ge.f32.partialorder %v418, 0.0
    %v420 = vlaneseq
    %v421 = vshrl.u32 %v420, 7
    %v422 = vsub.s32 0, %v421
    %v423 = vrot.slane %v386, %v422
    %v424 = vmul.f32 %v423, %v418
    %v425 = vsel %vm419, %v418, %v424
    %v426 = vld [vmem:[%s3 + $0xa8] sm:$0xff]
    %v427 = vld [vmem:[%s3 + $0xb0] sm:$0xff]
    %v428 = vld [vmem:[%s3 + $0xb8] sm:$0xff]
    %v429 = vld [vmem:[%s3 + $0xc0] sm:$0xff]
    %v430 = vld [vmem:[%s3 + $0xc8] sm:$0xff]
    %v431 = vld [vmem:[%s3 + $0xd0] sm:$0xff]
    %v433 = vsel %vm387, %v425, 0
    %435 = vmatprep.subr.mxu0 0.0
    %436 = vmatpush1.msra.mxu0 %v426
    %437 = vmatprep.subr.mxu0 0.0
    %438 = vmatpush1.msra.mxu0 %v427
    %439 = vmatprep.subr.mxu0 0.0
    %440 = vmatpush1.msra.mxu0 %v428
    %441 = vmatprep.subr.mxu0 0.0
    %442 = vmatpush1.msra.mxu0 %v429
    %443 = vmatprep.subr.mxu0 0.0
    %444 = vmatpush1.msra.mxu0 %v430
    %445 = vmatprep.subr.mxu0 0.0
    %446 = vmatpush1.msra.mxu0 %v431
    %447 = vmatprep.subr.mxu0 0.0
    %448 = vmatpush1.msra.mxu0 0.0
    %449 = vmatprep.subr.mxu0 0.0
    %450 = vmatpush1.msra.mxu0 0.0
    %451 = vmatprep.subr.mxu0 0.0
    %452 = vmatpush1.msra.mxu0 0.0
    %453 = vmatprep.subr.mxu0 0.0
    %454 = vmatpush1.msra.mxu0 0.0
    %455 = vmatprep.subr.mxu0 0.0
    %456 = vmatpush1.msra.mxu0 0.0
    %457 = vmatprep.subr.mxu0 0.0
    %458 = vmatpush1.msra.mxu0 0.0
    %459 = vmatprep.subr.mxu0 0.0
    %460 = vmatpush1.msra.mxu0 0.0
    %461 = vmatprep.subr.mxu0 0.0
    %462 = vmatpush1.msra.mxu0 0.0
    %463 = vmatprep.subr.mxu0 0.0
    %464 = vmatpush1.msra.mxu0 0.0
    %465 = vmatprep.subr.mxu0 0.0
    %466 = vmatpush1.msra.mxu0 0.0
    %467 = vmatprep.subr.mxu0 0.0
    %468 = vmatpush1.msra.mxu0 0.0
    %469 = vmatprep.subr.mxu0 0.0
    %470 = vmatpush1.msra.mxu0 0.0
    %471 = vmatprep.subr.mxu0 0.0
    %472 = vmatpush1.msra.mxu0 0.0
    %473 = vmatprep.subr.mxu0 0.0
    %474 = vmatpush1.msra.mxu0 0.0
    %475 = vmatprep.subr.mxu0 0.0
    %476 = vmatpush1.msra.mxu0 0.0
    %477 = vmatprep.subr.mxu0 0.0
    %478 = vmatpush1.msra.mxu0 0.0
    %479 = vmatprep.subr.mxu0 0.0
    %480 = vmatpush1.msra.mxu0 0.0
    %481 = vmatprep.subr.mxu0 0.0
    %482 = vmatpush1.msra.mxu0 0.0
    %483 = vmatprep.subr.mxu0 0.0
    %484 = vmatpush1.msra.mxu0 0.0
    %485 = vmatprep.subr.mxu0 0.0
    %486 = vmatpush1.msra.mxu0 0.0
    %487 = vmatprep.subr.mxu0 0.0
    %488 = vmatpush1.msra.mxu0 0.0
    %489 = vmatprep.subr.mxu0 0.0
    %490 = vmatpush1.msra.mxu0 0.0
    %491 = vmatprep.subr.mxu0 0.0
    %492 = vmatpush1.msra.mxu0 0.0
    %493 = vmatprep.subr.mxu0 0.0
    %494 = vmatpush1.msra.mxu0 0.0
    %495 = vmatprep.subr.mxu0 0.0
    %496 = vmatpush1.msra.mxu0 0.0
    %497 = vmatprep.subr.mxu0 0.0
    %498 = vmatpush1.msra.mxu0 0.0
    %499 = vmatprep.mubr.f32.mxu0 0.0
    %500 = vmatmul.mubr.f32.gmra.mrb[0].mxu0 %v433
    %v501 = vpop.f32.mrb[0].mxu0
    %v502 = vadd.f32 0.0, %v501
    %v503 = vpop.f32.mrb[0].mxu0
    %504 = vdwg.mxu0
    %v505 = vld [vmem:[%s4 + $0x10] sm:$0x1]
    %v506 = vld [vmem:[%s4 + $0x11] sm:$0x1]
    %v507 = vld [vmem:[%s4 + $0x12] sm:$0x1]
    %v508 = vsel %vm181, %v502, 0.0
    %v509 = vrot.slane %v508, 4
    %v510 = vadd.f32 %v508, %v509
    %v511 = vrot.slane %v510, 2
    %v512 = vadd.f32 %v510, %v511
    %v513 = vrot.slane %v512, 1
    %v514 = vadd.f32 %v512, %v513
    %v515 = vmul.f32 %v514, %v267
    %v516 = vsub.f32 %v502, %v515
    %v517 = vmul.f32 %v516, %v516
    %v518 = vsel %vm181, %v517, 0.0
    %v519 = vrot.slane %v518, 4
    %v520 = vadd.f32 %v518, %v519
    %v521 = vrot.slane %v520, 2
    %v522 = vadd.f32 %v520, %v521
    %v523 = vrot.slane %v522, 1
    %v524 = vadd.f32 %v522, %v523
    %v525 = vmul.f32 %v524, %v267
    %v526 = vadd.f32 %v525, 1e-05
    %v527 = vrsqrt.pop %v526
    %v528 = vmul.f32 %v505, %v527
    %v529 = vlaneseq
    %v530 = vshrl.u32 %v529, 7
    %v531 = vsub.s32 0, %v530
    %v532 = vrot.slane %v528, %v531
    %v533 = vmul.f32 %v516, %v532
    %v534 = vlaneseq
    %v535 = vshrl.u32 %v534, 7
    %v536 = vsub.s32 0, %v535
    %v537 = vrot.slane %v506, %v536
    %v538 = vadd.f32 %v533, %v537
    %vm539 = vcmp.ge.f32.partialorder %v538, 0.0
    %v540 = vlaneseq
    %v541 = vshrl.u32 %v540, 7
    %v542 = vsub.s32 0, %v541
    %v543 = vrot.slane %v507, %v542
    %v544 = vmul.f32 %v543, %v538
    %v545 = vsel %vm539, %v538, %v544
    %546 = vst.msk [vmem:[#allocation2] sm:$0xff] %vm181, %v545
    // Predicated region
    $region22: #{forward.1} parent=1 // pred_check
      _
    $region23: #{forward.1} parent=1 // pred_check_branch
      %548 = sbr.rel (0) target = $region25
    $region24: #{forward.1} parent=1 // pred_region
      %s550 = ssub.s32 128, 128
      %551 = vsyncadd [#allocation3], %s550
      %s553 = sshll.u32 [#allocation2], 4
      %s554 = int_to_ptr.vmem [resolvable:$true] %s553
      %556 = dma.vmem_to_hbm [thread:$0]  %s554, 128, %s5, [#allocation3]
    $region25: #{forward.1} parent=1 // pred_fallthru
      _
    // Predicated region
    $region26: #{forward.1} parent=1 // pred_check
      _
    $region27: #{forward.1} parent=1 // pred_check_branch
      %558 = sbr.rel (0) target = $region29
    $region28: #{forward.1} parent=1 // pred_region
      %559 = dma.done [#allocation3], 128
    $region29: #{forward.1} parent=1 // pred_fallthru
      _
    %560 = vsyncpa [#allocation3], 1

</llo_original>
